<compile_context>
chip_gen: v7x
topology: tpu7x:2x2x1
jax: 0.10.0
libtpu: 0.0.40
codegen_flags: <defaults>
</compile_context>

<pallas_src>
import jax
import jax.numpy as jnp
from jax.experimental import pallas as pl
from jax.experimental.pallas import tpu as pltpu


# ------------------------------ helpers ----------------------------------- #

def _round_up(x, m):
    return ((x + m - 1) // m) * m


def _node_tile(n):
    """Row/reduction tile for the node dim. Large tiles for HBM roofline, but
    keep >= 2 row blocks whenever possible so v7x's two TCs both get work."""
    for t in (512, 256, 128):
        if t <= max(128, n // 2):
            return t
    return 128


def _col_tile(dim_pad):
    """Output-column tile: cover the full padded f_out in one block when it
    fits comfortably (so the N^2 A panel is streamed exactly once)."""
    if dim_pad <= 1024:
        return dim_pad
    for t in (512, 256, 128):
        if dim_pad % t == 0:
            return t
    return 128


def _red_tile(dim_pad):
    for t in (1024, 512, 256, 128):
        if dim_pad % t == 0:
            return t
    return 128


def _build_adj_padded(edge_index, n, n_pad, dtype):
    """(A + I) built directly into the padded buffer in the streaming dtype.

    Entries are small integer edge counts -> exact in bf16. Duplicate edges
    are summed (matches PyG GCNConv aggregation).
    TODO(synk): PyG's add_remaining_self_loops only adds loops to nodes that
    lack one; here we always add the identity (A + I), same as the reference.
    """
    src = edge_index[0]
    dst = edge_index[1]
    a = jnp.zeros((n_pad, n_pad), dtype)
    a = a.at[dst, src].add(jnp.ones(src.shape, dtype))
    idx = jnp.arange(n)
    return a.at[idx, idx].add(jnp.ones((n,), dtype))


# ----------------------------- Pallas kernels ------------------------------ #

def _mm_scale_bias_kernel(a_ref, b_ref, rs_ref, bias_ref, o_ref, acc_ref):
    """One (i, j, k) grid step of OUT = rowscale * (A @ B) + bias, f32 acc."""
    @pl.when(pl.program_id(2) == 0)
    def _():
        acc_ref[...] = jnp.zeros_like(acc_ref)

    acc_ref[...] += jnp.dot(a_ref[...], b_ref[...],
                            preferred_element_type=jnp.float32)

    @pl.when(pl.program_id(2) == pl.num_programs(2) - 1)
    def _():
        # Row-scale (degree normalization) + bias fused into finalize: free
        # VPU work hidden under the MXU / DMA pipeline.
        o_ref[...] = (acc_ref[...] * rs_ref[...] + bias_ref[...]).astype(o_ref.dtype)


def _fused_gcn_kernel(a_ref, x_ref, w_ref, rs_ref, bias_ref, o_ref):
    """Whole tiny-graph GCN layer in one kernel (everything resident in VMEM):
       OUT = rs * ((A+I) @ (rs * (X @ W))) + b, all f32."""
    h = rs_ref[...] * jnp.dot(x_ref[...], w_ref[...],
                              preferred_element_type=jnp.float32)
    agg = jnp.dot(a_ref[...], h, preferred_element_type=jnp.float32)
    o_ref[...] = agg * rs_ref[...] + bias_ref[...]


def matmul_scale_bias(a, b, rowscale, bias, *, tm, tk, tn, out_dtype):
    """Tiled OUT[M,N] = rowscale[M,1] * (A[M,K] @ B[K,N]) + bias[1,N].

    Caller guarantees M % tm == K % tk == N % tn == 0 and that all tiles are
    128-multiples (lane-dense, unmasked stores).
    """
    m, k = a.shape
    k2, n = b.shape
    assert k == k2 and rowscale.shape == (m, 1) and bias.shape == (1, n)
    assert m % tm == 0 and k % tk == 0 and n % tn == 0

    grid = (m // tm, n // tn, k // tk)

    # Double-buffered working set (+ f32 accumulator); keep the limit modest so
    # the same config is safe on v7x (64 MiB/TC) while still above the 32 MiB
    # scoped default when larger tiles need it on v5e/v6e.
    ob = jnp.dtype(out_dtype).itemsize
    ws = 2 * (tm * tk * a.dtype.itemsize + tk * tn * b.dtype.itemsize
              + tm * tn * ob + tm * 4 + tn * 4) + tm * tn * 4
    vmem_limit = int(min(48 * 1024 * 1024, max(32 * 1024 * 1024, 3 * ws)))

    return pl.pallas_call(
        _mm_scale_bias_kernel,
        out_shape=jax.ShapeDtypeStruct((m, n), out_dtype),
        grid_spec=pltpu.PrefetchScalarGridSpec(
            num_scalar_prefetch=0,
            grid=grid,
            in_specs=[
                pl.BlockSpec((tm, tk), lambda i, j, kk: (i, kk)),
                pl.BlockSpec((tk, tn), lambda i, j, kk: (kk, j)),
                pl.BlockSpec((tm, 1), lambda i, j, kk: (i, 0)),
                pl.BlockSpec((1, tn), lambda i, j, kk: (0, j)),
            ],
            out_specs=pl.BlockSpec((tm, tn), lambda i, j, kk: (i, j)),
            scratch_shapes=[pltpu.VMEM((tm, tn), jnp.float32)],
        ),
        compiler_params=pltpu.CompilerParams(
            dimension_semantics=("parallel", "parallel", "arbitrary"),
            vmem_limit_bytes=vmem_limit,
        ),
    )(a, b, rowscale, bias)


# ------------------------------ GCN forward -------------------------------- #

def _gcn_fused_small(x, edge_index, w, b, d_inv_sqrt,
                     n, f_in, f_out, fi_pad, fo_pad):
    """Tiny-graph path: one fused pallas_call, no HBM round trip for H.

    Node (sublane) dim padded only to a multiple of 16; lane dims to 128.
    f32 throughout (bandwidth is irrelevant at this size; better accuracy).
    """
    n_p = _round_up(n, 16)
    a_p = _build_adj_padded(edge_index, n, n_p, jnp.float32)
    x_p = jnp.zeros((n_p, fi_pad), jnp.float32).at[:n, :f_in].set(x)
    w_p = jnp.zeros((fi_pad, fo_pad), jnp.float32).at[:f_in, :f_out].set(w)
    rs_p = jnp.zeros((n_p, 1), jnp.float32).at[:n, 0].set(d_inv_sqrt)
    b_p = jnp.zeros((1, fo_pad), jnp.float32).at[:, :f_out].set(b)

    out_p = pl.pallas_call(
        _fused_gcn_kernel,
        out_shape=jax.ShapeDtypeStruct((n_p, fo_pad), jnp.float32),
    )(a_p, x_p, w_p, rs_p, b_p)
    return out_p[:n, :f_out]


def _gcn_tiled(x, edge_index, w, b, d_inv_sqrt,
               n, f_in, f_out, fi_pad, fo_pad):
    """General path: two tiled matmul+scale+bias launches, bf16 streaming."""
    t_node = _node_tile(n)
    n_pad = _round_up(n, t_node)          # pad up to the tile (no 128 fallback)
    tn = _col_tile(fo_pad)                 # single j block when f_out fits
    tk1 = _red_tile(fi_pad)

    # Single-pass padded builds in the streaming dtype (no f32->cast->copy).
    a_p = _build_adj_padded(edge_index, n, n_pad, jnp.bfloat16)   # exact ints
    x_p = jnp.zeros((n_pad, fi_pad), jnp.bfloat16).at[:n, :f_in].set(
        x.astype(jnp.bfloat16))
    w_p = jnp.zeros((fi_pad, fo_pad), jnp.bfloat16).at[:f_in, :f_out].set(
        w.astype(jnp.bfloat16))
    rs_p = jnp.zeros((n_pad, 1), jnp.float32).at[:n, 0].set(d_inv_sqrt)
    b_p = jnp.zeros((1, fo_pad), jnp.float32).at[:, :f_out].set(b)
    zero_b = jnp.zeros((1, fo_pad), jnp.float32)

    # Stage 1: H' = D^-1/2 (X @ W). bf16 result -> stage 2 streams half bytes.
    h = matmul_scale_bias(x_p, w_p, rs_p, zero_b,
                          tm=t_node, tk=tk1, tn=tn, out_dtype=jnp.bfloat16)
    # Stage 2: OUT = D^-1/2 ((A+I) @ H') + b.
    out_p = matmul_scale_bias(a_p, h, rs_p, b_p,
                              tm=t_node, tk=t_node, tn=tn, out_dtype=jnp.float32)
    return out_p[:n, :f_out]


def gcn_pallas_forward(x, edge_index, w, b):
    """out = D^-1/2 (A+I) D^-1/2 @ (x @ w) + b via Pallas kernels."""
    n, f_in = x.shape
    f_out = w.shape[1]
    fi_pad = _round_up(max(f_in, 128), 128)
    fo_pad = _round_up(max(f_out, 128), 128)

    # Degrees (incl. self-loop) straight from edge_index: O(E), no N^2 pass.
    deg = jnp.zeros((n,), jnp.float32).at[edge_index[1]].add(1.0) + 1.0
    d_inv_sqrt = jax.lax.rsqrt(deg)        # deg >= 1 always

    n16 = _round_up(n, 16)
    fused_bytes = 4 * (n16 * n16 + n16 * (fi_pad + 2 * fo_pad) + fi_pad * fo_pad)
    if n <= 256 and fused_bytes <= 4 * 1024 * 1024:
        return _gcn_fused_small(x, edge_index, w, b, d_inv_sqrt,
                                n, f_in, f_out, fi_pad, fo_pad)
    return _gcn_tiled(x, edge_index, w, b, d_inv_sqrt,
                      n, f_in, f_out, fi_pad, fo_pad)


# ------------------------------ glue (JAX) -------------------------------- #

def build_norm_adj(edge_index, num_nodes):
    """Reference-only dense normalized adjacency: D^-1/2 (A+I) D^-1/2."""
    src = edge_index[0]
    dst = edge_index[1]
    a = jnp.zeros((num_nodes, num_nodes), jnp.float32).at[dst, src].add(1.0)
    a = a + jnp.eye(num_nodes, dtype=jnp.float32)
    deg = a.sum(axis=1)
    d_inv_sqrt = jnp.where(deg > 0, 1.0 / jnp.sqrt(deg), 0.0)
    return d_inv_sqrt[:, None] * a * d_inv_sqrt[None, :]


class GCN:
    """Single GCNConv-style layer: gnn(x, edge_index)."""

    def __init__(self, in_dim, out_dim, key):
        k_w, _ = jax.random.split(key)
        limit = jnp.sqrt(6.0 / (in_dim + out_dim))      # Glorot-uniform init
        self.w = jax.random.uniform(
            k_w, (in_dim, out_dim), jnp.float32, -limit, limit)
        self.b = jnp.zeros((1, out_dim), jnp.float32)

    def __call__(self, x, edge_index):
        return gcn_pallas_forward(x.astype(jnp.float32), edge_index,
                                  self.w, self.b)


class GraphData:
    def __init__(self, edge_index):
        self.edge_index = edge_index


class GNNWrapper:
    """JAX port of the PyTorch GNNWrapper forward semantics."""

    def __init__(self, gnn, use_edge_weights=False, use_edge_attr=False,
                 access_graph_index=False):
        assert not use_edge_weights or not use_edge_attr, (
            'Currently, do not support use of both edge weights and edge attr')
        self.use_edge_weights = use_edge_weights
        self.use_edge_attr = use_edge_attr
        self.access_graph_index = access_graph_index
        self.gnn = gnn

    def __call__(self, x, data):
        if self.access_graph_index:
            edge_index = data.graph_edge_index
        else:
            edge_index = data.edge_index
        if self.use_edge_weights:
            # TODO(synk): edge-weight path unused for default wrapper config
            return self.gnn(x, edge_index,
                            data.graph_edge_weight if self.access_graph_index
                            else data.edge_weight)
        if self.use_edge_attr:
            # TODO(synk): edge-attr path unused for default wrapper config
            return self.gnn(x, edge_index, data.edge_attr)
        return self.gnn(x, edge_index)


# --------------------------------- main ------------------------------------ #

if __name__ == "__main__":
    def run_case(num_nodes, in_dim, out_dim, num_edges, key, tol):
        k_x, k_e, k_p = jax.random.split(key, 3)
        x = jax.random.normal(k_x, (num_nodes, in_dim), jnp.float32)
        edge_index = jax.random.randint(k_e, (2, num_edges), 0, num_nodes,
                                        dtype=jnp.int32)
        gnn = GCN(in_dim, out_dim, k_p)
        wrapper = GNNWrapper(gnn)
        out = wrapper(x, GraphData(edge_index))
        jax.block_until_ready(out)

        a_hat = build_norm_adj(edge_index, num_nodes)
        ref = a_hat @ (x @ gnn.w) + gnn.b
        assert out.shape == (num_nodes, out_dim)
        err = float(jnp.max(jnp.abs(out - ref)))
        assert jnp.allclose(out, ref, atol=tol, rtol=tol), err

    key = jax.random.PRNGKey(0)
    k1, k2 = jax.random.split(key)

    # 1) Tiny demo graph -> fused single-kernel path (f32, no H round trip).
    run_case(num_nodes=16, in_dim=32, out_dim=32, num_edges=40, key=k1,
             tol=2e-2)
    # 2) Larger graph -> tiled two-stage path (bf16 streaming, f32 accumulate).
    run_case(num_nodes=300, in_dim=96, out_dim=160, num_edges=900, key=k2,
             tol=8e-2)

    print("KERNEL_OK")
</pallas_src>

<mosaic_0001>
module attributes {stable_mosaic.version = 11 : i64} {
  func.func @_fused_gcn_kernel(%arg0: memref<16x16xf32, #tpu.memory_space<vmem>>, %arg1: memref<16x128xf32, #tpu.memory_space<vmem>>, %arg2: memref<128x128xf32, #tpu.memory_space<vmem>>, %arg3: memref<16x1xf32, #tpu.memory_space<vmem>>, %arg4: memref<1x128xf32, #tpu.memory_space<vmem>>, %arg5: memref<16x128xf32, #tpu.memory_space<vmem>>) attributes {dimension_semantics = [], scalar_prefetch = 0 : i64, scratch_operands = 0 : i64, tpu.core_type = #tpu.core_type<tc>} {
    %c0 = arith.constant 0 : index
    %c0_0 = arith.constant 0 : index
    %0 = vector.load %arg3[%c0, %c0_0] : memref<16x1xf32, #tpu.memory_space<vmem>>, vector<16x1xf32>
    %c0_1 = arith.constant 0 : index
    %c0_2 = arith.constant 0 : index
    %1 = vector.load %arg1[%c0_1, %c0_2] : memref<16x128xf32, #tpu.memory_space<vmem>>, vector<16x128xf32>
    %c0_3 = arith.constant 0 : index
    %c0_4 = arith.constant 0 : index
    %2 = vector.load %arg2[%c0_3, %c0_4] : memref<128x128xf32, #tpu.memory_space<vmem>>, vector<128x128xf32>
    %cst = arith.constant dense<0.000000e+00> : vector<16x128xf32>
    %3 = tpu.matmul %1, %2, %cst {dimension_numbers = #tpu.dot_dimension_numbers<[1], [0], [0], [1], [0, 0, 1, 1], [], []>} : vector<16x128xf32>, vector<128x128xf32>, vector<16x128xf32> -> vector<16x128xf32>
    %4 = vector.broadcast %0 : vector<16x1xf32> to vector<16x128xf32>
    %5 = arith.mulf %4, %3 : vector<16x128xf32>
    %c0_5 = arith.constant 0 : index
    %c0_6 = arith.constant 0 : index
    %6 = vector.load %arg0[%c0_5, %c0_6] : memref<16x16xf32, #tpu.memory_space<vmem>>, vector<16x16xf32>
    %cst_7 = arith.constant dense<0.000000e+00> : vector<16x128xf32>
    %7 = tpu.matmul %6, %5, %cst_7 {dimension_numbers = #tpu.dot_dimension_numbers<[1], [0], [0], [1], [0, 0, 1, 1], [], []>} : vector<16x16xf32>, vector<16x128xf32>, vector<16x128xf32> -> vector<16x128xf32>
    %c0_8 = arith.constant 0 : index
    %c0_9 = arith.constant 0 : index
    %8 = vector.load %arg3[%c0_8, %c0_9] : memref<16x1xf32, #tpu.memory_space<vmem>>, vector<16x1xf32>
    %9 = vector.broadcast %8 : vector<16x1xf32> to vector<16x128xf32>
    %10 = arith.mulf %7, %9 : vector<16x128xf32>
    %c0_10 = arith.constant 0 : index
    %c0_11 = arith.constant 0 : index
    %11 = vector.load %arg4[%c0_10, %c0_11] : memref<1x128xf32, #tpu.memory_space<vmem>>, vector<1x128xf32>
    %12 = vector.broadcast %11 : vector<1x128xf32> to vector<16x128xf32>
    %13 = arith.addf %10, %12 : vector<16x128xf32>
    %c0_12 = arith.constant 0 : index
    %c0_13 = arith.constant 0 : index
    %14 = vector.load %arg5[%c0_12, %c0_13] : memref<16x128xf32, #tpu.memory_space<vmem>>, vector<16x128xf32>
    tpu.vector_store %arg5[%c0_12, %c0_13], %13 {strides = array<i32>} : memref<16x128xf32, #tpu.memory_space<vmem>>, vector<16x128xf32>,
    return
  }
}

</mosaic_0001>

<llo_original>
// kernel: tpu_custom_call.1
$region0: #{tpu_custom_call.1}
  #allocation0 [shape = 'u32[]', space=smem, size = 0x4, offset = 0x4, fixed_abs, tag = 'smem constant byte address 0x4 - core index']
  #allocation1 [shape = 'u32[144,128]{1,0:T(1,128)}', space=vmem, size = 0x12000, scoped, tag = 'internal scratch']
  %s0 = inlined_call_operand.vmem [shape: f32[16,16], index: 0, kind: input, shape index: {}]
  %s1 = inlined_call_operand.hbm [shape: f32[16,128], index: 1, kind: input, shape index: {}]
  %s2 = inlined_call_operand.hbm [shape: f32[128,128], index: 2, kind: input, shape index: {}]
  %s3 = inlined_call_operand.vmem [shape: f32[16,1], index: 3, kind: input, shape index: {}]
  %s4 = inlined_call_operand.vmem [shape: f32[1,128], index: 4, kind: input, shape index: {}]
  %s5 = inlined_call_operand.hbm [shape: f32[16,128], index: 5, kind: output, shape index: {}]
  %s6 = sld [smem:[#allocation0]]
  $region38: #{tpu_custom_call.1} parent=0
    _
  %s8 = ssub.s32 1, %s6
  %s9 = scalar_select 0, %s8, %s6
  $region1: #{tpu_custom_call.1} parent=0
    #allocation2 [shape = 'u8[8192]{0}', space=vmem, size = 0x2000, scoped, tag = 'input window, operand 1, single buffered']
    #allocation3 [shape = 's32[1]{0}', space=sflag, size = 0x4, scoped, tag = 'scoped memory for tpu_custom_call.1']
    #allocation4 [shape = 's32[1]{0}', space=sflag, size = 0x4, scoped, tag = 'scoped memory for tpu_custom_call.1']
    #allocation5 [shape = 'u8[65536]{0}', space=vmem, size = 0x10000, scoped, tag = 'input window, operand 2, single buffered']
    #allocation6 [shape = 's32[1]{0}', space=sflag, size = 0x4, scoped, tag = 'scoped memory for tpu_custom_call.1']
    #allocation7 [shape = 'u8[8192]{0}', space=vmem, size = 0x2000, scoped, tag = 'output window, operand 0, single buffered']
    %10 = vsyncpa [#allocation3], 0
    %11 = vsyncpa [#allocation6], 0
    %12 = vsyncpa [#allocation4], 0
    // Predicated region
    $region2: #{tpu_custom_call.1} parent=1 // pred_check
      _
    $region3: #{tpu_custom_call.1} parent=1 // pred_check_branch
      %14 = sbr.rel (0) target = $region5
    $region4: #{tpu_custom_call.1} parent=1 // pred_region
      _
    $region5: #{tpu_custom_call.1} parent=1 // pred_fallthru
      _
    // Predicated region
    $region6: #{tpu_custom_call.1} parent=1 // pred_check
      _
    $region7: #{tpu_custom_call.1} parent=1 // pred_check_branch
      %16 = sbr.rel (0) target = $region9
    $region8: #{tpu_custom_call.1} parent=1 // pred_region
      %s18 = ssub.s32 256, 256
      %19 = vsyncadd [#allocation3], %s18
      %s20 = sshll.u32 [#allocation2], 4
      %s21 = int_to_ptr.vmem [resolvable:$true] %s20
      %26 = dma.hbm_to_vmem [thread:$0]  %s1, 256, %s21, [#allocation3], 128, 128, 8
    $region9: #{tpu_custom_call.1} parent=1 // pred_fallthru
      _
    // Predicated region
    $region10: #{tpu_custom_call.1} parent=1 // pred_check
      _
    $region11: #{tpu_custom_call.1} parent=1 // pred_check_branch
      %28 = sbr.rel (0) target = $region13
    $region12: #{tpu_custom_call.1} parent=1 // pred_region
      %s30 = ssub.s32 2048, 2048
      %31 = vsyncadd [#allocation6], %s30
      %s32 = sshll.u32 [#allocation5], 4
      %s33 = int_to_ptr.vmem [resolvable:$true] %s32
      %38 = dma.hbm_to_vmem [thread:$0]  %s2, 2048, %s33, [#allocation6], 128, 128, 8
    $region13: #{tpu_custom_call.1} parent=1 // pred_fallthru
      _
    // Predicated region
    $region14: #{tpu_custom_call.1} parent=1 // pred_check
      _
    $region15: #{tpu_custom_call.1} parent=1 // pred_check_branch
      %40 = sbr.rel (0) target = $region17
    $region16: #{tpu_custom_call.1} parent=1 // pred_region
      _
    $region17: #{tpu_custom_call.1} parent=1 // pred_fallthru
      _
    // Predicated region
    $region18: #{tpu_custom_call.1} parent=1 // pred_check
      _
    $region19: #{tpu_custom_call.1} parent=1 // pred_check_branch
      %42 = sbr.rel (0) target = $region21
    $region20: #{tpu_custom_call.1} parent=1 // pred_region
      _
    $region21: #{tpu_custom_call.1} parent=1 // pred_fallthru
      _
    // Predicated region
    $region22: #{tpu_custom_call.1} parent=1 // pred_check
      _
    $region23: #{tpu_custom_call.1} parent=1 // pred_check_branch
      %44 = sbr.rel (0) target = $region25
    $region24: #{tpu_custom_call.1} parent=1 // pred_region
      %45 = dma.done [#allocation3], 256
    $region25: #{tpu_custom_call.1} parent=1 // pred_fallthru
      _
    // Predicated region
    $region26: #{tpu_custom_call.1} parent=1 // pred_check
      _
    $region27: #{tpu_custom_call.1} parent=1 // pred_check_branch
      %47 = sbr.rel (0) target = $region29
    $region28: #{tpu_custom_call.1} parent=1 // pred_region
      %48 = dma.done [#allocation6], 2048
    $region29: #{tpu_custom_call.1} parent=1 // pred_fallthru
      _
    %v49 = vld [vmem:[%s3] sm:$0xff]
    %v50 = vld [vmem:[%s3 + $0x8] sm:$0xff]
    %v51 = vld [vmem:[#allocation2] sm:$0xff]
    %v52 = vld [vmem:[#allocation2 + $0x8] sm:$0xff]
    %v53 = vld [vmem:[#allocation5] sm:$0xff]
    %v54 = vld [vmem:[#allocation5 + $0x8] sm:$0xff]
    %v55 = vld [vmem:[#allocation5 + $0x10] sm:$0xff]
    %v56 = vld [vmem:[#allocation5 + $0x18] sm:$0xff]
    %v57 = vld [vmem:[#allocation5 + $0x20] sm:$0xff]
    %v58 = vld [vmem:[#allocation5 + $0x28] sm:$0xff]
    %v59 = vld [vmem:[#allocation5 + $0x30] sm:$0xff]
    %v60 = vld [vmem:[#allocation5 + $0x38] sm:$0xff]
    %v61 = vld [vmem:[#allocation5 + $0x40] sm:$0xff]
    %v62 = vld [vmem:[#allocation5 + $0x48] sm:$0xff]
    %v63 = vld [vmem:[#allocation5 + $0x50] sm:$0xff]
    %v64 = vld [vmem:[#allocation5 + $0x58] sm:$0xff]
    %v65 = vld [vmem:[#allocation5 + $0x60] sm:$0xff]
    %v66 = vld [vmem:[#allocation5 + $0x68] sm:$0xff]
    %v67 = vld [vmem:[#allocation5 + $0x70] sm:$0xff]
    %v68 = vld [vmem:[#allocation5 + $0x78] sm:$0xff]
    %69 = vmatprep.subr.mxu0 0.0
    %70 = vmatpush1.msra.mxu0 %v53
    %71 = vmatprep.subr.mxu0 0.0
    %72 = vmatpush1.msra.mxu0 %v54
    %73 = vmatprep.subr.mxu0 0.0
    %74 = vmatpush1.msra.mxu0 %v55
    %75 = vmatprep.subr.mxu0 0.0
    %76 = vmatpush1.msra.mxu0 %v56
    %77 = vmatprep.subr.mxu0 0.0
    %78 = vmatpush1.msra.mxu0 %v57
    %79 = vmatprep.subr.mxu0 0.0
    %80 = vmatpush1.msra.mxu0 %v58
    %81 = vmatprep.subr.mxu0 0.0
    %82 = vmatpush1.msra.mxu0 %v59
    %83 = vmatprep.subr.mxu0 0.0
    %84 = vmatpush1.msra.mxu0 %v60
    %85 = vmatprep.subr.mxu0 0.0
    %86 = vmatpush1.msra.mxu0 %v61
    %87 = vmatprep.subr.mxu0 0.0
    %88 = vmatpush1.msra.mxu0 %v62
    %89 = vmatprep.subr.mxu0 0.0
    %90 = vmatpush1.msra.mxu0 %v63
    %91 = vmatprep.subr.mxu0 0.0
    %92 = vmatpush1.msra.mxu0 %v64
    %93 = vmatprep.subr.mxu0 0.0
    %94 = vmatpush1.msra.mxu0 %v65
    %95 = vmatprep.subr.mxu0 0.0
    %96 = vmatpush1.msra.mxu0 %v66
    %97 = vmatprep.subr.mxu0 0.0
    %98 = vmatpush1.msra.mxu0 %v67
    %99 = vmatprep.subr.mxu0 0.0
    %100 = vmatpush1.msra.mxu0 %v68
    %101 = vmatprep.subr.mxu0 0.0
    %102 = vmatpush1.msra.mxu0 0.0
    %103 = vmatprep.subr.mxu0 0.0
    %104 = vmatpush1.msra.mxu0 0.0
    %105 = vmatprep.subr.mxu0 0.0
    %106 = vmatpush1.msra.mxu0 0.0
    %107 = vmatprep.subr.mxu0 0.0
    %108 = vmatpush1.msra.mxu0 0.0
    %109 = vmatprep.subr.mxu0 0.0
    %110 = vmatpush1.msra.mxu0 0.0
    %111 = vmatprep.subr.mxu0 0.0
    %112 = vmatpush1.msra.mxu0 0.0
    %113 = vmatprep.subr.mxu0 0.0
    %114 = vmatpush1.msra.mxu0 0.0
    %115 = vmatprep.subr.mxu0 0.0
    %116 = vmatpush1.msra.mxu0 0.0
    %117 = vmatprep.subr.mxu0 0.0
    %118 = vmatpush1.msra.mxu0 0.0
    %119 = vmatprep.subr.mxu0 0.0
    %120 = vmatpush1.msra.mxu0 0.0
    %121 = vmatprep.subr.mxu0 0.0
    %122 = vmatpush1.msra.mxu0 0.0
    %123 = vmatprep.subr.mxu0 0.0
    %124 = vmatpush1.msra.mxu0 0.0
    %125 = vmatprep.subr.mxu0 0.0
    %126 = vmatpush1.msra.mxu0 0.0
    %127 = vmatprep.subr.mxu0 0.0
    %128 = vmatpush1.msra.mxu0 0.0
    %129 = vmatprep.subr.mxu0 0.0
    %130 = vmatpush1.msra.mxu0 0.0
    %131 = vmatprep.subr.mxu0 0.0
    %132 = vmatpush1.msra.mxu0 0.0
    %133 = vmatprep.mubr.f32.mxu0 0.0
    %134 = vmatmul.mubr.f32.gmra.mrb[0].mxu0 %v51
    %v135 = vpop.f32.mrb[0].mxu0
    %v136 = vadd.f32 0.0, %v135
    %v137 = vpop.f32.mrb[0].mxu0
    %138 = vmatprep.mubr.f32.mxu0 0.0
    %139 = vmatmul.mubr.f32.gmra.mrb[0].mxu0 %v52
    %v140 = vpop.f32.mrb[0].mxu0
    %v141 = vadd.f32 0.0, %v140
    %v142 = vpop.f32.mrb[0].mxu0
    %143 = vdwg.mxu0
    %145 = vset.pattern.permute.xlu0 0
    %146 = vperm.xlu0 %145, %v49
    %v147 = vpop.permute.xlu0 %146
    %150 = vset.pattern.permute.xlu0 0
    %151 = vperm.xlu0 %150, %v50
    %v152 = vpop.permute.xlu0 %151
    %v154 = vmul.f32 %v147, %v136
    %v155 = vmul.f32 %v152, %v141
    %v156 = vld [vmem:[%s0] sm:$0xff]
    %v157 = vld [vmem:[%s0 + $0x8] sm:$0xff]
    %vm158 = vcmask 130048
    %v160 = vsel %vm158, %v156, 0
    %v163 = vsel %vm158, %v157, 0
    %165 = vmatprep.subr.mxu0 0.0
    %166 = vmatpush1.msra.mxu0 %v154
    %167 = vmatprep.subr.mxu0 0.0
    %168 = vmatpush1.msra.mxu0 %v155
    %169 = vmatprep.subr.mxu0 0.0
    %170 = vmatpush1.msra.mxu0 0.0
    %171 = vmatprep.subr.mxu0 0.0
    %172 = vmatpush1.msra.mxu0 0.0
    %173 = vmatprep.subr.mxu0 0.0
    %174 = vmatpush1.msra.mxu0 0.0
    %175 = vmatprep.subr.mxu0 0.0
    %176 = vmatpush1.msra.mxu0 0.0
    %177 = vmatprep.subr.mxu0 0.0
    %178 = vmatpush1.msra.mxu0 0.0
    %179 = vmatprep.subr.mxu0 0.0
    %180 = vmatpush1.msra.mxu0 0.0
    %181 = vmatprep.subr.mxu0 0.0
    %182 = vmatpush1.msra.mxu0 0.0
    %183 = vmatprep.subr.mxu0 0.0
    %184 = vmatpush1.msra.mxu0 0.0
    %185 = vmatprep.subr.mxu0 0.0
    %186 = vmatpush1.msra.mxu0 0.0
    %187 = vmatprep.subr.mxu0 0.0
    %188 = vmatpush1.msra.mxu0 0.0
    %189 = vmatprep.subr.mxu0 0.0
    %190 = vmatpush1.msra.mxu0 0.0
    %191 = vmatprep.subr.mxu0 0.0
    %192 = vmatpush1.msra.mxu0 0.0
    %193 = vmatprep.subr.mxu0 0.0
    %194 = vmatpush1.msra.mxu0 0.0
    %195 = vmatprep.subr.mxu0 0.0
    %196 = vmatpush1.msra.mxu0 0.0
    %197 = vmatprep.subr.mxu0 0.0
    %198 = vmatpush1.msra.mxu0 0.0
    %199 = vmatprep.subr.mxu0 0.0
    %200 = vmatpush1.msra.mxu0 0.0
    %201 = vmatprep.subr.mxu0 0.0
    %202 = vmatpush1.msra.mxu0 0.0
    %203 = vmatprep.subr.mxu0 0.0
    %204 = vmatpush1.msra.mxu0 0.0
    %205 = vmatprep.subr.mxu0 0.0
    %206 = vmatpush1.msra.mxu0 0.0
    %207 = vmatprep.subr.mxu0 0.0
    %208 = vmatpush1.msra.mxu0 0.0
    %209 = vmatprep.subr.mxu0 0.0
    %210 = vmatpush1.msra.mxu0 0.0
    %211 = vmatprep.subr.mxu0 0.0
    %212 = vmatpush1.msra.mxu0 0.0
    %213 = vmatprep.subr.mxu0 0.0
    %214 = vmatpush1.msra.mxu0 0.0
    %215 = vmatprep.subr.mxu0 0.0
    %216 = vmatpush1.msra.mxu0 0.0
    %217 = vmatprep.subr.mxu0 0.0
    %218 = vmatpush1.msra.mxu0 0.0
    %219 = vmatprep.subr.mxu0 0.0
    %220 = vmatpush1.msra.mxu0 0.0
    %221 = vmatprep.subr.mxu0 0.0
    %222 = vmatpush1.msra.mxu0 0.0
    %223 = vmatprep.subr.mxu0 0.0
    %224 = vmatpush1.msra.mxu0 0.0
    %225 = vmatprep.subr.mxu0 0.0
    %226 = vmatpush1.msra.mxu0 0.0
    %227 = vmatprep.subr.mxu0 0.0
    %228 = vmatpush1.msra.mxu0 0.0
    %229 = vmatprep.mubr.f32.mxu0 0.0
    %230 = vmatmul.mubr.f32.gmra.mrb[0].mxu0 %v160
    %v231 = vpop.f32.mrb[0].mxu0
    %v232 = vadd.f32 0.0, %v231
    %v233 = vpop.f32.mrb[0].mxu0
    %234 = vmatprep.mubr.f32.mxu0 0.0
    %235 = vmatmul.mubr.f32.gmra.mrb[0].mxu0 %v163
    %v236 = vpop.f32.mrb[0].mxu0
    %v237 = vadd.f32 0.0, %v236
    %v238 = vpop.f32.mrb[0].mxu0
    %239 = vdwg.mxu0
    %v240 = vmul.f32 %v232, %v147
    %v241 = vmul.f32 %v237, %v152
    %v242 = vld [vmem:[%s4] sm:$0x1]
    %v244 = vlaneseq
    %v245 = vshrl.u32 %v244, 7
    %v246 = vsub.s32 0, %v245
    %v247 = vrot.slane %v242, %v246
    %v249 = vadd.f32 %v240, %v247
    %v250 = vadd.f32 %v241, %v247
    %251 = vst [vmem:[#allocation7] sm:$0xff] %v249
    %252 = vst [vmem:[#allocation7 + $0x8] sm:$0xff] %v250
    // Predicated region
    $region30: #{tpu_custom_call.1} parent=1 // pred_check
      _
    $region31: #{tpu_custom_call.1} parent=1 // pred_check_branch
      %254 = sbr.rel (0) target = $region33
    $region32: #{tpu_custom_call.1} parent=1 // pred_region
      %s256 = ssub.s32 256, 256
      %257 = vsyncadd [#allocation4], %s256
      %s258 = sshll.u32 [#allocation7], 4
      %s259 = int_to_ptr.vmem [resolvable:$true] %s258
      %264 = dma.vmem_to_hbm [thread:$0]  %s259, 256, %s5, [#allocation4], 128, 128, 8
    $region33: #{tpu_custom_call.1} parent=1 // pred_fallthru
      _
    // Predicated region
    $region34: #{tpu_custom_call.1} parent=1 // pred_check
      _
    $region35: #{tpu_custom_call.1} parent=1 // pred_check_branch
      %266 = sbr.rel (0) target = $region37
    $region36: #{tpu_custom_call.1} parent=1 // pred_region
      %267 = dma.done [#allocation4], 256
    $region37: #{tpu_custom_call.1} parent=1 // pred_fallthru
      _
    %268 = vsyncpa [#allocation3], 1
    %269 = vsyncpa [#allocation6], 1
    %270 = vsyncpa [#allocation4], 1

</llo_original>
